<compile_context>
chip_gen: v7x
topology: tpu7x:2x2x1
jax: 0.10.0
libtpu: 0.0.40
codegen_flags: <defaults>
</compile_context>

<pallas_src>
import functools

import jax
import jax.numpy as jnp
from jax import lax
from jax.experimental import pallas as pl
from jax.experimental.pallas import tpu as pltpu


def _down_block_kernel(xq_ref, w_ref, b_ref, o_ref, *, cin, eps):
    """Fused reflect-pad(1) + 3x3/stride-2 conv + InstanceNorm + ReLU, one batch item.

    xq_ref : (1, Ho, Wo, 4*Cin)  phase-packed input; last dim = four
             (row-parity, col-parity) planes [(e,e),(e,o),(o,e),(o,o)] x Cin.
    w_ref  : (9*Cin, Cout)       im2col weight, tap-major (dy, dx), channel fastest.
    b_ref  : (1, Cout)           conv bias.
    o_ref  : (1, Ho, Wo, Cout)   output block.
    """
    C = cin
    xq = xq_ref[0].astype(jnp.float32)              # (Ho, Wo, 4C)
    Ho, Wo = xq.shape[0], xq.shape[1]

    # The four stride-2 phase planes of the (unpadded) input.
    ee = xq[:, :, 0 * C:1 * C]                      # x[2i,   2j  ]
    eo = xq[:, :, 1 * C:2 * C]                      # x[2i,   2j+1]
    oe = xq[:, :, 2 * C:3 * C]                      # x[2i+1, 2j  ]
    oo = xq[:, :, 3 * C:4 * C]                      # x[2i+1, 2j+1]

    # "Previous odd row/col" with edge duplication == ReflectionPad2d(1):
    # padded row 0 maps to original row 1, so output row 0 re-uses the first
    # odd row (same for columns).  No padded array is materialized anywhere.
    def rprev(a):                                   # -> x[2i-1, ...]
        return jnp.concatenate([a[0:1], a[:-1]], axis=0)

    def cprev(a):                                   # -> x[..., 2j-1, :]
        return jnp.concatenate([a[:, 0:1], a[:, :-1]], axis=1)

    # Nine 3x3 taps at stride 2, ordered (dy, dx) row-major to match w_ref.
    taps = [
        rprev(cprev(oo)),   # (0,0): x[2i-1, 2j-1]
        rprev(oe),          # (0,1): x[2i-1, 2j  ]
        rprev(oo),          # (0,2): x[2i-1, 2j+1]
        cprev(eo),          # (1,0): x[2i,   2j-1]
        ee,                 # (1,1): x[2i,   2j  ]
        eo,                 # (1,2): x[2i,   2j+1]
        cprev(oo),          # (2,0): x[2i+1, 2j-1]
        oe,                 # (2,1): x[2i+1, 2j  ]
        oo,                 # (2,2): x[2i+1, 2j+1]
    ]

    # im2col: one matmul with K = 9*Cin instead of nine K = Cin dots.
    patches = jnp.concatenate(taps, axis=-1)        # (Ho, Wo, 9C)
    pm = patches.reshape(Ho * Wo, 9 * C)            # (Ho*Wo, 9C)
    y = jnp.dot(pm, w_ref[...].astype(jnp.float32),
                preferred_element_type=jnp.float32,
                precision=lax.Precision.HIGHEST)    # (Ho*Wo, Cout)
    y = y + b_ref[0].astype(jnp.float32)

    # InstanceNorm2d (affine=False, biased variance, eps=1e-5) + ReLU, in VMEM.
    mean = jnp.mean(y, axis=0, keepdims=True)       # (1, Cout)
    var = jnp.mean(jnp.square(y - mean), axis=0, keepdims=True)
    y = (y - mean) * lax.rsqrt(var + eps)
    y = jnp.maximum(y, 0.0)

    o_ref[0] = y.reshape(Ho, Wo, -1).astype(o_ref.dtype)


def down_block_forward(x_nchw, params):
    """Forward pass matching the PyTorch DownBlock. Input/output NCHW."""
    w_hwio, bias = params                           # (3,3,Cin,Cout), (Cout,)
    B, Cin, H, W = x_nchw.shape
    if H % 2 or W % 2:
        # TODO(synk): odd H/W needs an extra bottom/right reflected tap.
        raise ValueError("DownBlock Pallas kernel requires even H and W")
    Ho, Wo = H // 2, W // 2
    Cout = w_hwio.shape[-1]

    # Single relayout: NCHW -> stride-2 phase-packed NHWC (B, Ho, Wo, 4*Cin).
    x = jnp.transpose(x_nchw, (0, 2, 3, 1))                       # (B, H, W, Cin)
    x = x.reshape(B, Ho, 2, Wo, 2, Cin)
    x = jnp.transpose(x, (0, 1, 3, 2, 4, 5)).reshape(B, Ho, Wo, 4 * Cin)

    w_mat = w_hwio.reshape(9 * Cin, Cout)           # tap-major (dy,dx), ch fastest
    b2d = bias.reshape(1, Cout)

    kernel = functools.partial(_down_block_kernel, cin=Cin, eps=1e-5)
    out_nhwc = pl.pallas_call(
        kernel,
        out_shape=jax.ShapeDtypeStruct((B, Ho, Wo, Cout), x_nchw.dtype),
        grid_spec=pltpu.PrefetchScalarGridSpec(
            num_scalar_prefetch=0,
            grid=(B,),
            in_specs=[
                pl.BlockSpec((1, Ho, Wo, 4 * Cin), lambda n: (n, 0, 0, 0)),
                pl.BlockSpec((9 * Cin, Cout), lambda n: (0, 0)),
                pl.BlockSpec((1, Cout), lambda n: (0, 0)),
            ],
            out_specs=pl.BlockSpec((1, Ho, Wo, Cout), lambda n: (n, 0, 0, 0)),
        ),
        compiler_params=pltpu.CompilerParams(
            # batch items are independent -> shard across v7x's 2 TensorCores
            dimension_semantics=("parallel",)),
    )(x, w_mat, b2d)

    return jnp.transpose(out_nhwc, (0, 3, 1, 2))    # NHWC -> NCHW


def _reference_forward(x_nchw, params, eps=1e-5):
    """Plain-JAX reference (lax.conv + instance norm + relu)."""
    w_hwio, bias = params
    w_oihw = jnp.transpose(w_hwio, (3, 2, 0, 1))    # (Cout, Cin, 3, 3)
    xp = jnp.pad(x_nchw, ((0, 0), (0, 0), (1, 1), (1, 1)), mode="reflect")
    y = lax.conv_general_dilated(
        xp, w_oihw, window_strides=(2, 2), padding="VALID",
        dimension_numbers=("NCHW", "OIHW", "NCHW"),
        precision=lax.Precision.HIGHEST)
    y = y + bias.reshape(1, -1, 1, 1)
    mean = y.mean(axis=(2, 3), keepdims=True)
    var = jnp.square(y - mean).mean(axis=(2, 3), keepdims=True)
    y = (y - mean) / jnp.sqrt(var + eps)
    return jnp.maximum(y, 0.0)


def init_params(key, in_channels, out_channels):
    """PyTorch-style Conv2d init; weights stored as (kh, kw, Cin, Cout)."""
    k1, k2 = jax.random.split(key)
    fan_in = in_channels * 3 * 3
    bound = 1.0 / (fan_in ** 0.5)
    w = jax.random.uniform(k1, (3, 3, in_channels, out_channels),
                           jnp.float32, -bound, bound)
    b = jax.random.uniform(k2, (out_channels,), jnp.float32, -bound, bound)
    return (w, b)


if __name__ == "__main__":
    key = jax.random.PRNGKey(0)
    k_x, k_p = jax.random.split(key)

    B, Cin, Cout, H, W = 2, 4, 8, 16, 16
    x = jax.random.normal(k_x, (B, Cin, H, W), jnp.float32)
    params = init_params(k_p, Cin, Cout)

    fwd = jax.jit(down_block_forward)
    out = jax.block_until_ready(fwd(x, params))
    ref = jax.block_until_ready(_reference_forward(x, params))

    assert out.shape == (B, Cout, H // 2, W // 2), out.shape
    assert jnp.allclose(out, ref, atol=1e-4, rtol=1e-4), (
        "mismatch vs reference; max abs err = "
        f"{float(jnp.max(jnp.abs(out - ref)))}")

    print("KERNEL_OK")
</pallas_src>

<mosaic_0001>
module attributes {stable_mosaic.version = 11 : i64} {
  func.func @_down_block_kernel(%arg0: i32, %arg1: memref<1x8x8x16xf32, #tpu.memory_space<vmem>>, %arg2: memref<36x8xf32, #tpu.memory_space<vmem>>, %arg3: memref<1x8xf32, #tpu.memory_space<vmem>>, %arg4: memref<1x8x8x8xf32, #tpu.memory_space<vmem>>) attributes {dimension_semantics = [#tpu.dimension_semantics<parallel>], iteration_bounds = array<i64: 2>, scalar_prefetch = 0 : i64, scratch_operands = 0 : i64, tpu.core_type = #tpu.core_type<tc>, window_params = [{transform_indices = @transform_0, window_bounds = array<i64: 1, 8, 8, 16>}, {pipeline_mode = #tpu.pipeline_mode<synchronous>, transform_indices = @transform_1, window_bounds = array<i64: 36, 8>}, {pipeline_mode = #tpu.pipeline_mode<synchronous>, transform_indices = @transform_2, window_bounds = array<i64: 1, 8>}, {transform_indices = @transform_3, window_bounds = array<i64: 1, 8, 8, 8>}]} {
    %c0 = arith.constant 0 : index
    %c0_0 = arith.constant 0 : index
    %c0_1 = arith.constant 0 : index
    %c0_2 = arith.constant 0 : index
    %0 = vector.load %arg1[%c0, %c0_0, %c0_1, %c0_2] : memref<1x8x8x16xf32, #tpu.memory_space<vmem>>, vector<1x8x8x16xf32>
    %1 = vector.shape_cast %0 : vector<1x8x8x16xf32> to vector<8x8x16xf32>
    %2 = vector.extract_strided_slice %1 {offsets = [0, 0, 0], sizes = [8, 8, 4], strides = [1, 1, 1]} : vector<8x8x16xf32> to vector<8x8x4xf32>
    %3 = vector.extract_strided_slice %1 {offsets = [0, 0, 4], sizes = [8, 8, 4], strides = [1, 1, 1]} : vector<8x8x16xf32> to vector<8x8x4xf32>
    %4 = vector.extract_strided_slice %1 {offsets = [0, 0, 8], sizes = [8, 8, 4], strides = [1, 1, 1]} : vector<8x8x16xf32> to vector<8x8x4xf32>
    %5 = vector.extract_strided_slice %1 {offsets = [0, 0, 12], sizes = [8, 8, 4], strides = [1, 1, 1]} : vector<8x8x16xf32> to vector<8x8x4xf32>
    %6 = vector.extract_strided_slice %5 {offsets = [0, 0, 0], sizes = [8, 1, 4], strides = [1, 1, 1]} : vector<8x8x4xf32> to vector<8x1x4xf32>
    %7 = vector.extract_strided_slice %5 {offsets = [0, 0, 0], sizes = [8, 7, 4], strides = [1, 1, 1]} : vector<8x8x4xf32> to vector<8x7x4xf32>
    %8 = tpu.concatenate %6, %7 in 1 : vector<8x1x4xf32>, vector<8x7x4xf32> -> vector<8x8x4xf32>
    %9 = vector.extract_strided_slice %8 {offsets = [0, 0, 0], sizes = [1, 8, 4], strides = [1, 1, 1]} : vector<8x8x4xf32> to vector<1x8x4xf32>
    %10 = vector.extract_strided_slice %8 {offsets = [0, 0, 0], sizes = [7, 8, 4], strides = [1, 1, 1]} : vector<8x8x4xf32> to vector<7x8x4xf32>
    %11 = tpu.concatenate %9, %10 in 0 : vector<1x8x4xf32>, vector<7x8x4xf32> -> vector<8x8x4xf32>
    %12 = vector.extract_strided_slice %4 {offsets = [0, 0, 0], sizes = [1, 8, 4], strides = [1, 1, 1]} : vector<8x8x4xf32> to vector<1x8x4xf32>
    %13 = vector.extract_strided_slice %4 {offsets = [0, 0, 0], sizes = [7, 8, 4], strides = [1, 1, 1]} : vector<8x8x4xf32> to vector<7x8x4xf32>
    %14 = tpu.concatenate %12, %13 in 0 : vector<1x8x4xf32>, vector<7x8x4xf32> -> vector<8x8x4xf32>
    %15 = vector.extract_strided_slice %5 {offsets = [0, 0, 0], sizes = [1, 8, 4], strides = [1, 1, 1]} : vector<8x8x4xf32> to vector<1x8x4xf32>
    %16 = vector.extract_strided_slice %5 {offsets = [0, 0, 0], sizes = [7, 8, 4], strides = [1, 1, 1]} : vector<8x8x4xf32> to vector<7x8x4xf32>
    %17 = tpu.concatenate %15, %16 in 0 : vector<1x8x4xf32>, vector<7x8x4xf32> -> vector<8x8x4xf32>
    %18 = vector.extract_strided_slice %3 {offsets = [0, 0, 0], sizes = [8, 1, 4], strides = [1, 1, 1]} : vector<8x8x4xf32> to vector<8x1x4xf32>
    %19 = vector.extract_strided_slice %3 {offsets = [0, 0, 0], sizes = [8, 7, 4], strides = [1, 1, 1]} : vector<8x8x4xf32> to vector<8x7x4xf32>
    %20 = tpu.concatenate %18, %19 in 1 : vector<8x1x4xf32>, vector<8x7x4xf32> -> vector<8x8x4xf32>
    %21 = vector.extract_strided_slice %5 {offsets = [0, 0, 0], sizes = [8, 1, 4], strides = [1, 1, 1]} : vector<8x8x4xf32> to vector<8x1x4xf32>
    %22 = vector.extract_strided_slice %5 {offsets = [0, 0, 0], sizes = [8, 7, 4], strides = [1, 1, 1]} : vector<8x8x4xf32> to vector<8x7x4xf32>
    %23 = tpu.concatenate %21, %22 in 1 : vector<8x1x4xf32>, vector<8x7x4xf32> -> vector<8x8x4xf32>
    %24 = tpu.concatenate %11, %14, %17, %20, %2, %3, %23, %4, %5 in 2 : vector<8x8x4xf32>, vector<8x8x4xf32>, vector<8x8x4xf32>, vector<8x8x4xf32>, vector<8x8x4xf32>, vector<8x8x4xf32>, vector<8x8x4xf32>, vector<8x8x4xf32>, vector<8x8x4xf32> -> vector<8x8x36xf32>
    %25 = vector.shape_cast %24 : vector<8x8x36xf32> to vector<64x36xf32>
    %c0_3 = arith.constant 0 : index
    %c0_4 = arith.constant 0 : index
    %26 = vector.load %arg2[%c0_3, %c0_4] : memref<36x8xf32, #tpu.memory_space<vmem>>, vector<36x8xf32>
    %cst = arith.constant dense<0.000000e+00> : vector<64x8xf32>
    %27 = tpu.matmul %25, %26, %cst {dimension_numbers = #tpu.dot_dimension_numbers<[1], [0], [0], [1], [0, 0, 1, 1], [], []>, precision = #tpu.contract_precision<fp32>} : vector<64x36xf32>, vector<36x8xf32>, vector<64x8xf32> -> vector<64x8xf32>
    %c0_5 = arith.constant 0 : index
    %c0_6 = arith.constant 0 : index
    %28 = vector.load %arg3[%c0_5, %c0_6] : memref<1x8xf32, #tpu.memory_space<vmem>>, vector<1x8xf32>
    %29 = vector.shape_cast %28 : vector<1x8xf32> to vector<8xf32>
    %30 = vector.shape_cast %29 : vector<8xf32> to vector<1x8xf32>
    %31 = vector.broadcast %30 : vector<1x8xf32> to vector<64x8xf32>
    %32 = arith.addf %27, %31 : vector<64x8xf32>
    %cst_7 = arith.constant dense<0.000000e+00> : vector<8xf32>
    %33 = vector.multi_reduction <add>, %32, %cst_7 [0] : vector<64x8xf32> to vector<8xf32>
    %34 = vector.shape_cast %33 : vector<8xf32> to vector<1x8xf32>
    %cst_8 = arith.constant 6.400000e+01 : f32
    %35 = vector.broadcast %cst_8 : f32 to vector<1x8xf32>
    %36 = arith.divf %34, %35 : vector<1x8xf32>
    %37 = vector.broadcast %36 : vector<1x8xf32> to vector<64x8xf32>
    %38 = arith.subf %32, %37 : vector<64x8xf32>
    %39 = arith.mulf %38, %38 : vector<64x8xf32>
    %cst_9 = arith.constant dense<0.000000e+00> : vector<8xf32>
    %40 = vector.multi_reduction <add>, %39, %cst_9 [0] : vector<64x8xf32> to vector<8xf32>
    %41 = vector.shape_cast %40 : vector<8xf32> to vector<1x8xf32>
    %cst_10 = arith.constant 6.400000e+01 : f32
    %42 = vector.broadcast %cst_10 : f32 to vector<1x8xf32>
    %43 = arith.divf %41, %42 : vector<1x8xf32>
    %44 = vector.broadcast %36 : vector<1x8xf32> to vector<64x8xf32>
    %45 = arith.subf %32, %44 : vector<64x8xf32>
    %cst_11 = arith.constant 9.99999974E-6 : f32
    %46 = vector.broadcast %cst_11 : f32 to vector<1x8xf32>
    %47 = arith.addf %43, %46 : vector<1x8xf32>
    %48 = math.rsqrt %47 : vector<1x8xf32>
    %49 = vector.broadcast %48 : vector<1x8xf32> to vector<64x8xf32>
    %50 = arith.mulf %45, %49 : vector<64x8xf32>
    %cst_12 = arith.constant 0.000000e+00 : f32
    %51 = vector.broadcast %cst_12 : f32 to vector<64x8xf32>
    %52 = arith.maximumf %50, %51 : vector<64x8xf32>
    %53 = vector.shape_cast %52 : vector<64x8xf32> to vector<8x8x8xf32>
    %c0_13 = arith.constant 0 : index
    %c0_14 = arith.constant 0 : index
    %c0_15 = arith.constant 0 : index
    %c0_16 = arith.constant 0 : index
    %54 = vector.load %arg4[%c0_13, %c0_14, %c0_15, %c0_16] : memref<1x8x8x8xf32, #tpu.memory_space<vmem>>, vector<1x8x8x8xf32>
    %55 = vector.shape_cast %54 : vector<1x8x8x8xf32> to vector<8x8x8xf32>
    %56 = vector.shape_cast %53 : vector<8x8x8xf32> to vector<1x8x8x8xf32>
    tpu.vector_store %arg4[%c0_13, %c0_14, %c0_15, %c0_16], %56 {strides = array<i32>} : memref<1x8x8x8xf32, #tpu.memory_space<vmem>>, vector<1x8x8x8xf32>,
    return
  }
  func.func @transform_0(%arg0: i32) -> (i32, i32, i32, i32) {
    %c0_i32 = arith.constant 0 : i32
    %c0_i32_0 = arith.constant 0 : i32
    %c0_i32_1 = arith.constant 0 : i32
    %c0_i32_2 = arith.constant 0 : i32
    return %arg0, %c0_i32, %c0_i32_0, %c0_i32_1 : i32, i32, i32, i32
  }
  func.func @transform_1(%arg0: i32) -> (i32, i32) {
    %c0_i32 = arith.constant 0 : i32
    %c0_i32_0 = arith.constant 0 : i32
    %c0_i32_1 = arith.constant 0 : i32
    return %c0_i32, %c0_i32_0 : i32, i32
  }
  func.func @transform_2(%arg0: i32) -> (i32, i32) {
    %c0_i32 = arith.constant 0 : i32
    %c0_i32_0 = arith.constant 0 : i32
    %c0_i32_1 = arith.constant 0 : i32
    return %c0_i32, %c0_i32_0 : i32, i32
  }
  func.func @transform_3(%arg0: i32) -> (i32, i32, i32, i32) {
    %c0_i32 = arith.constant 0 : i32
    %c0_i32_0 = arith.constant 0 : i32
    %c0_i32_1 = arith.constant 0 : i32
    %c0_i32_2 = arith.constant 0 : i32
    return %arg0, %c0_i32, %c0_i32_0, %c0_i32_1 : i32, i32, i32, i32
  }
}

</mosaic_0001>

<llo_original>
// kernel: down_block_forward.1
$region0: #{down_block_forward.1}
  #allocation0 [shape = 'u32[]', space=smem, size = 0x4, offset = 0x4, fixed_abs, tag = 'smem constant byte address 0x4 - core index']
  #allocation1 [shape = 'u32[144,128]{1,0:T(1,128)}', space=vmem, size = 0x12000, scoped, tag = 'internal scratch']
  %s0 = inlined_call_operand.vmem [shape: f32[2,8,8,16], index: 0, kind: input, shape index: {}]
  %s1 = inlined_call_operand.vmem [shape: f32[36,8], index: 1, kind: input, shape index: {}]
  %s2 = inlined_call_operand.vmem [shape: f32[1,8], index: 2, kind: input, shape index: {}]
  %s3 = inlined_call_operand.vmem [shape: f32[2,8,8,8], index: 3, kind: output, shape index: {}]
  %s4 = sld [smem:[#allocation0]]
  $region45: #{down_block_forward.1} parent=0
    _
  %s6 = ssub.s32 1, %s4
  %s7 = scalar_select 0, %s6, %s4
  loop: start=0, step=1, limit=4
  $region2: #{down_block_forward.1} parent=0 // loop_pre_header
    _
  $region3: #{down_block_forward.1} parent=0 // loop_header
    %s9 = sphi 0, %s13
    %p10 = scmp.ge.s32.totalorder %s9, 4
    %s19 = sphi 0, %s21
    %s22 = sphi 0, %s19
    %s23 = sphi 0, %s22
    %s39 = sphi 0, %s23
    %s43 = sphi 0, %s43
    %s45 = sphi 0, %s43
    %s46 = sphi 0, %s45
    %s60 = sphi 0, %s46
    %s64 = sphi 0, %s64
    %s66 = sphi 0, %s64
    %s67 = sphi 0, %s66
    %s81 = sphi 0, %s67
    %s87 = sphi 0, %s89
    %s90 = sphi 0, %s87
    %s91 = sphi 0, %s90
    %s107 = sphi 0, %s91
  $region4: #{down_block_forward.1} parent=0 // loop_header_branch
    %12 = sbr.rel (%p10) target = $region8
  $region5: #{down_block_forward.1} parent=0 // loop_body
    %s14 = ssub.s32 %s9, 1
    %s15 = ssub.s32 %s9, 2
    %s16 = sadd.s32 %s9, 1
    %s17 = ssub.s32 %s9, %s16
    %p18 = scmp.eq.s32.totalorder %s17, 0
    %s20 = sadd.s32 %s19, 1
    %s21 = scalar_select %p18, %s19, %s20
    %p24 = pneg %p18
    %p25 = scmp.eq.s32.totalorder %s9, 1
    %p26 = por %p24, %p25
    %p27 = scmp.ne.s32.totalorder %s19, %s22
    %p28 = scmp.eq.s32.totalorder %s9, 0
    %p29 = por %p27, %p28
    %p30 = scmp.ne.s32.totalorder %s19, %s22
    %p31 = scmp.eq.s32.totalorder %s14, 1
    %p32 = por %p30, %p31
    %p33 = scmp.ne.s32.totalorder %s22, %s23
    %p34 = scmp.eq.s32.totalorder %s14, 0
    %p35 = por %p33, %p34
    %p36 = scmp.ne.s32.totalorder %s22, %s23
    %p37 = scmp.eq.s32.totalorder %s15, 1
    %p38 = por %p36, %p37
    %p40 = scmp.ne.s32.totalorder %s23, %s39
    %p41 = scmp.eq.s32.totalorder %s15, 0
    %p42 = por %p40, %p41
    %s44 = sadd.s32 %s43, 1
    %p47 = scmp.eq.s32.totalorder %s9, 1
    %p48 = scmp.ne.s32.totalorder %s43, %s45
    %p49 = scmp.eq.s32.totalorder %s9, 0
    %p50 = por %p48, %p49
    %p51 = scmp.ne.s32.totalorder %s43, %s45
    %p52 = scmp.eq.s32.totalorder %s14, 1
    %p53 = por %p51, %p52
    %p54 = scmp.ne.s32.totalorder %s45, %s46
    %p55 = scmp.eq.s32.totalorder %s14, 0
    %p56 = por %p54, %p55
    %p57 = scmp.ne.s32.totalorder %s45, %s46
    %p58 = scmp.eq.s32.totalorder %s15, 1
    %p59 = por %p57, %p58
    %p61 = scmp.ne.s32.totalorder %s46, %s60
    %p62 = scmp.eq.s32.totalorder %s15, 0
    %p63 = por %p61, %p62
    %s65 = sadd.s32 %s64, 1
    %p68 = scmp.eq.s32.totalorder %s9, 1
    %p69 = scmp.ne.s32.totalorder %s64, %s66
    %p70 = scmp.eq.s32.totalorder %s9, 0
    %p71 = por %p69, %p70
    %p72 = scmp.ne.s32.totalorder %s64, %s66
    %p73 = scmp.eq.s32.totalorder %s14, 1
    %p74 = por %p72, %p73
    %p75 = scmp.ne.s32.totalorder %s66, %s67
    %p76 = scmp.eq.s32.totalorder %s14, 0
    %p77 = por %p75, %p76
    %p78 = scmp.ne.s32.totalorder %s66, %s67
    %p79 = scmp.eq.s32.totalorder %s15, 1
    %p80 = por %p78, %p79
    %p82 = scmp.ne.s32.totalorder %s67, %s81
    %p83 = scmp.eq.s32.totalorder %s15, 0
    %p84 = por %p82, %p83
    %s85 = ssub.s32 %s9, %s16
    %p86 = scmp.eq.s32.totalorder %s85, 0
    %s88 = sadd.s32 %s87, 1
    %s89 = scalar_select %p86, %s87, %s88
    %p92 = pneg %p86
    %p93 = scmp.eq.s32.totalorder %s9, 1
    %p94 = por %p92, %p93
    %p95 = scmp.ne.s32.totalorder %s87, %s90
    %p96 = scmp.eq.s32.totalorder %s9, 0
    %p97 = por %p95, %p96
    %p98 = scmp.ne.s32.totalorder %s87, %s90
    %p99 = scmp.eq.s32.totalorder %s14, 1
    %p100 = por %p98, %p99
    %p101 = scmp.ne.s32.totalorder %s90, %s91
    %p102 = scmp.eq.s32.totalorder %s14, 0
    %p103 = por %p101, %p102
    %p104 = scmp.ne.s32.totalorder %s90, %s91
    %p105 = scmp.eq.s32.totalorder %s15, 1
    %p106 = por %p104, %p105
    %p108 = scmp.ne.s32.totalorder %s91, %s107
    %p109 = scmp.eq.s32.totalorder %s15, 0
    %p110 = por %p108, %p109
    %p111 = scmp.le.s32.totalorder 1, %s9
    %p112 = scmp.lt.s32.totalorder %s9, 3
    %p113 = pnand %p111, %p112
    %p114 = pneg %p113
    // Predicated region
    $region9: #{down_block_forward.1} parent=5 // pred_check
      _
    $region10: #{down_block_forward.1} parent=5 // pred_check_branch
      %116 = sbr.rel (%p113) target = $region12
    $region11: #{down_block_forward.1} parent=5 // pred_region
      %s117 = ssub.s32 %s9, 1
      // Predicated region
      $region13: #{down_block_forward.1} parent=11 // pred_check
        %p118 = pneg %p56
      $region14: #{down_block_forward.1} parent=11 // pred_check_branch
        %120 = sbr.rel (%p118) target = $region16
      $region15: #{down_block_forward.1} parent=11 // pred_region
        _
      $region16: #{down_block_forward.1} parent=11 // pred_fallthru
        _
      // Predicated region
      $region17: #{down_block_forward.1} parent=11 // pred_check
        %p121 = pneg %p77
      $region18: #{down_block_forward.1} parent=11 // pred_check_branch
        %123 = sbr.rel (%p121) target = $region20
      $region19: #{down_block_forward.1} parent=11 // pred_region
        _
      $region20: #{down_block_forward.1} parent=11 // pred_fallthru
        _
    $region12: #{down_block_forward.1} parent=5 // pred_fallthru
      _
    %p124 = scmp.lt.s32.totalorder %s9, 2
    // Predicated region
    $region21: #{down_block_forward.1} parent=5 // pred_check
      %p125 = pneg %p124
    $region22: #{down_block_forward.1} parent=5 // pred_check_branch
      %127 = sbr.rel (%p125) target = $region24
    $region23: #{down_block_forward.1} parent=5 // pred_region
      // Predicated region
      $region25: #{down_block_forward.1} parent=23 // pred_check
        %p128 = pneg %p29
      $region26: #{down_block_forward.1} parent=23 // pred_check_branch
        %130 = sbr.rel (%p128) target = $region28
      $region27: #{down_block_forward.1} parent=23 // pred_region
        %p131 = scmp.lt.s32.totalorder %s9, 1
        %s132 = scalar_select %p131, %s9, 1
        %s133 = smul.addr %s132, 8
        %s134 = smul.addr %s133, 8
        %s135 = scalar_lea.vmem %s0, %s134
      $region28: #{down_block_forward.1} parent=23 // pred_fallthru
        _
    $region24: #{down_block_forward.1} parent=5 // pred_fallthru
      _
    %p136 = scmp.le.s32.totalorder 1, %s9
    %p137 = scmp.lt.s32.totalorder %s9, 3
    %p138 = pnand %p136, %p137
    %p139 = pneg %p138
    // Predicated region
    $region29: #{down_block_forward.1} parent=5 // pred_check
      _
    $region30: #{down_block_forward.1} parent=5 // pred_check_branch
      %141 = sbr.rel (%p138) target = $region32
    $region31: #{down_block_forward.1} parent=5 // pred_region
      %s142 = ssub.s32 %s9, 1
      %p143 = scmp.lt.s32.totalorder %s14, 1
      %s144 = scalar_select %p143, %s14, 1
      %s145 = smul.addr %s144, 8
      %s146 = smul.addr %s145, 8
      %s147 = scalar_lea.vmem %s0, %s146
      %p148 = pneg %p35
      %p149 = pneg %p32
      %p150 = pneg %p56
      %p151 = pneg %p53
      %p152 = pneg %p77
      %p153 = pneg %p74
      %p154 = pneg %p103
      %p155 = pneg %p100
      %p156 = scmp.lt.s32.totalorder %s14, 1
      %s157 = scalar_select %p156, %s14, 1
      %s158 = smul.addr %s157, 8
      %s159 = smul.addr %s158, 8
      %s160 = scalar_lea.vmem %s3, %s159
      %p161 = scmp.lt.s32.totalorder %s14, 1
      %s162 = scalar_select %p161, %s14, 1
      %s163 = smul.addr %s162, 8
      %s164 = smul.addr %s163, 8
      %s165 = scalar_lea.vmem %s0, %s164
      %p166 = scmp.lt.s32.totalorder %s14, 1
      %s167 = scalar_select %p166, %s14, 1
      %s168 = smul.addr %s167, 8
      %s169 = smul.addr %s168, 8
      %s170 = scalar_lea.vmem %s3, %s169
      %v171 = vld [vmem:[%s165] sm:$0xff]
      %v172 = vld [vmem:[%s165 + $0x8] sm:$0xff]
      %v173 = vld [vmem:[%s165 + $0x10] sm:$0xff]
      %v174 = vld [vmem:[%s165 + $0x18] sm:$0xff]
      %v175 = vld [vmem:[%s165 + $0x20] sm:$0xff]
      %v176 = vld [vmem:[%s165 + $0x28] sm:$0xff]
      %v177 = vld [vmem:[%s165 + $0x30] sm:$0xff]
      %v178 = vld [vmem:[%s165 + $0x38] sm:$0xff]
      %v187 = vrot.slane %v171, 7
      %v188 = vrot.slane %v172, 7
      %v189 = vrot.slane %v173, 7
      %v190 = vrot.slane %v174, 7
      %v191 = vrot.slane %v175, 7
      %v192 = vrot.slane %v176, 7
      %v193 = vrot.slane %v177, 7
      %v194 = vrot.slane %v178, 7
      %vm203 = vcmask 1040384
      %v204 = vsel %vm203, %v171, %v187
      %v205 = vsel %vm203, %v172, %v188
      %v206 = vsel %vm203, %v173, %v189
      %v207 = vsel %vm203, %v174, %v190
      %v208 = vsel %vm203, %v175, %v191
      %v209 = vsel %vm203, %v176, %v192
      %v210 = vsel %vm203, %v177, %v193
      %v211 = vsel %vm203, %v178, %v194
      %219 = vrot.lane.b32.xlu0 %v204, 116
      %v220 = vpop.permute.xlu0 %219
      %221 = vrot.lane.b32.xlu0 %v205, 116
      %v222 = vpop.permute.xlu0 %221
      %223 = vrot.lane.b32.xlu0 %v206, 116
      %v224 = vpop.permute.xlu0 %223
      %225 = vrot.lane.b32.xlu0 %v207, 116
      %v226 = vpop.permute.xlu0 %225
      %227 = vrot.lane.b32.xlu0 %v208, 116
      %v228 = vpop.permute.xlu0 %227
      %229 = vrot.lane.b32.xlu0 %v209, 116
      %v230 = vpop.permute.xlu0 %229
      %231 = vrot.lane.b32.xlu0 %v210, 116
      %v232 = vpop.permute.xlu0 %231
      %240 = vrot.lane.b32.xlu0 %v171, 124
      %v241 = vpop.permute.xlu0 %240
      %242 = vrot.lane.b32.xlu0 %v172, 124
      %v243 = vpop.permute.xlu0 %242
      %244 = vrot.lane.b32.xlu0 %v173, 124
      %v245 = vpop.permute.xlu0 %244
      %246 = vrot.lane.b32.xlu0 %v174, 124
      %v247 = vpop.permute.xlu0 %246
      %248 = vrot.lane.b32.xlu0 %v175, 124
      %v249 = vpop.permute.xlu0 %248
      %250 = vrot.lane.b32.xlu0 %v176, 124
      %v251 = vpop.permute.xlu0 %250
      %252 = vrot.lane.b32.xlu0 %v177, 124
      %v253 = vpop.permute.xlu0 %252
      %262 = vrot.lane.b32.xlu0 %v204, 8
      %v263 = vpop.permute.xlu0 %262
      %264 = vrot.lane.b32.xlu0 %v205, 8
      %v265 = vpop.permute.xlu0 %264
      %266 = vrot.lane.b32.xlu0 %v206, 8
      %v267 = vpop.permute.xlu0 %266
      %268 = vrot.lane.b32.xlu0 %v207, 8
      %v269 = vpop.permute.xlu0 %268
      %270 = vrot.lane.b32.xlu0 %v208, 8
      %v271 = vpop.permute.xlu0 %270
      %272 = vrot.lane.b32.xlu0 %v209, 8
      %v273 = vpop.permute.xlu0 %272
      %274 = vrot.lane.b32.xlu0 %v210, 8
      %v275 = vpop.permute.xlu0 %274
      %276 = vrot.lane.b32.xlu0 %v211, 8
      %v277 = vpop.permute.xlu0 %276
      %286 = vrot.lane.b32.xlu0 %v171, 16
      %v287 = vpop.permute.xlu0 %286
      %288 = vrot.lane.b32.xlu0 %v172, 16
      %v289 = vpop.permute.xlu0 %288
      %290 = vrot.lane.b32.xlu0 %v173, 16
      %v291 = vpop.permute.xlu0 %290
      %292 = vrot.lane.b32.xlu0 %v174, 16
      %v293 = vpop.permute.xlu0 %292
      %294 = vrot.lane.b32.xlu0 %v175, 16
      %v295 = vpop.permute.xlu0 %294
      %296 = vrot.lane.b32.xlu0 %v176, 16
      %v297 = vpop.permute.xlu0 %296
      %298 = vrot.lane.b32.xlu0 %v177, 16
      %v299 = vpop.permute.xlu0 %298
      %300 = vrot.lane.b32.xlu0 %v178, 16
      %v301 = vpop.permute.xlu0 %300
      %310 = vrot.lane.b32.xlu0 %v204, 12
      %v311 = vpop.permute.xlu0 %310
      %312 = vrot.lane.b32.xlu0 %v205, 12
      %v313 = vpop.permute.xlu0 %312
      %314 = vrot.lane.b32.xlu0 %v206, 12
      %v315 = vpop.permute.xlu0 %314
      %316 = vrot.lane.b32.xlu0 %v207, 12
      %v317 = vpop.permute.xlu0 %316
      %318 = vrot.lane.b32.xlu0 %v208, 12
      %v319 = vpop.permute.xlu0 %318
      %320 = vrot.lane.b32.xlu0 %v209, 12
      %v321 = vpop.permute.xlu0 %320
      %322 = vrot.lane.b32.xlu0 %v210, 12
      %v323 = vpop.permute.xlu0 %322
      %324 = vrot.lane.b32.xlu0 %v211, 12
      %v325 = vpop.permute.xlu0 %324
      %334 = vrot.lane.b32.xlu0 %v171, 20
      %v335 = vpop.permute.xlu0 %334
      %336 = vrot.lane.b32.xlu0 %v172, 20
      %v337 = vpop.permute.xlu0 %336
      %338 = vrot.lane.b32.xlu0 %v173, 20
      %v339 = vpop.permute.xlu0 %338
      %340 = vrot.lane.b32.xlu0 %v174, 20
      %v341 = vpop.permute.xlu0 %340
      %342 = vrot.lane.b32.xlu0 %v175, 20
      %v343 = vpop.permute.xlu0 %342
      %344 = vrot.lane.b32.xlu0 %v176, 20
      %v345 = vpop.permute.xlu0 %344
      %346 = vrot.lane.b32.xlu0 %v177, 20
      %v347 = vpop.permute.xlu0 %346
      %348 = vrot.lane.b32.xlu0 %v178, 20
      %v349 = vpop.permute.xlu0 %348
      %vm358 = vcmask 31744
      %v359 = vsel %vm358, %v220, %v241
      %v360 = vsel %vm358, %v222, %v243
      %v361 = vsel %vm358, %v224, %v245
      %v362 = vsel %vm358, %v226, %v247
      %v363 = vsel %vm358, %v228, %v249
      %v364 = vsel %vm358, %v230, %v251
      %v365 = vsel %vm358, %v232, %v253
      %vm366 = vcmask 64512
      %v367 = vsel %vm366, %v359, %v241
      %v368 = vsel %vm366, %v360, %v243
      %v369 = vsel %vm366, %v361, %v245
      %v370 = vsel %vm366, %v362, %v247
      %v371 = vsel %vm366, %v363, %v249
      %v372 = vsel %vm366, %v364, %v251
      %v373 = vsel %vm366, %v365, %v253
      %vm374 = vcmask 97280
      %v375 = vsel %vm374, %v367, %v263
      %v376 = vsel %vm374, %v367, %v265
      %v377 = vsel %vm374, %v368, %v267
      %v378 = vsel %vm374, %v369, %v269
      %v379 = vsel %vm374, %v370, %v271
      %v380 = vsel %vm374, %v371, %v273
      %v381 = vsel %vm374, %v372, %v275
      %v382 = vsel %vm374, %v373, %v277
      %vm383 = vcmask 130048
      %v384 = vsel %vm383, %v375, %v287
      %v385 = vsel %vm383, %v376, %v289
      %v386 = vsel %vm383, %v377, %v291
      %v387 = vsel %vm383, %v378, %v293
      %v388 = vsel %vm383, %v379, %v295
      %v389 = vsel %vm383, %v380, %v297
      %v390 = vsel %vm383, %v381, %v299
      %v391 = vsel %vm383, %v382, %v301
      %vm392 = vcmask 162816
      %v393 = vsel %vm392, %v384, %v287
      %v394 = vsel %vm392, %v385, %v289
      %v395 = vsel %vm392, %v386, %v291
      %v396 = vsel %vm392, %v387, %v293
      %v397 = vsel %vm392, %v388, %v295
      %v398 = vsel %vm392, %v389, %v297
      %v399 = vsel %vm392, %v390, %v299
      %v400 = vsel %vm392, %v391, %v301
      %vm401 = vcmask 195584
      %v402 = vsel %vm401, %v393, %v311
      %v403 = vsel %vm401, %v394, %v313
      %v404 = vsel %vm401, %v395, %v315
      %v405 = vsel %vm401, %v396, %v317
      %v406 = vsel %vm401, %v397, %v319
      %v407 = vsel %vm401, %v398, %v321
      %v408 = vsel %vm401, %v399, %v323
      %v409 = vsel %vm401, %v400, %v325
      %vm410 = vcmask 228352
      %v411 = vsel %vm410, %v402, %v335
      %v412 = vsel %vm410, %v403, %v337
      %v413 = vsel %vm410, %v404, %v339
      %v414 = vsel %vm410, %v405, %v341
      %v415 = vsel %vm410, %v406, %v343
      %v416 = vsel %vm410, %v407, %v345
      %v417 = vsel %vm410, %v408, %v347
      %v418 = vsel %vm410, %v409, %v349
      %vm419 = vcmask 261120
      %v420 = vsel %vm419, %v411, %v335
      %v421 = vsel %vm419, %v412, %v337
      %v422 = vsel %vm419, %v413, %v339
      %v423 = vsel %vm419, %v414, %v341
      %v424 = vsel %vm419, %v415, %v343
      %v425 = vsel %vm419, %v416, %v345
      %v426 = vsel %vm419, %v417, %v347
      %v427 = vsel %vm419, %v418, %v349
      %v428 = vld [vmem:[%s1] sm:$0xff]
      %v429 = vld [vmem:[%s1 + $0x8] sm:$0xff]
      %v430 = vld [vmem:[%s1 + $0x10] sm:$0xff]
      %v431 = vld [vmem:[%s1 + $0x18] sm:$0xff]
      %v432 = vld [vmem:[%s1 + $0x20] sm:$0xf]
      %v433 = vld [vmem:[%s2] sm:$0x1]
      %v435 = vlaneseq
      %v436 = vshrl.u32 %v435, 7
      %v437 = vsub.s32 0, %v436
      %v438 = vrot.slane %v433, %v437
      %vm440 = vcmask 293888
      %v442 = vsel %vm440, %v420, 0
      %v445 = vsel %vm440, %v421, 0
      %v448 = vsel %vm440, %v422, 0
      %v451 = vsel %vm440, %v423, 0
      %v454 = vsel %vm440, %v424, 0
      %v457 = vsel %vm440, %v425, 0
      %v460 = vsel %vm440, %v426, 0
      %v463 = vsel %vm440, %v427, 0
      %vm465 = vcmask 1043456
      %v467 = vsel %vm465, %v432, 0
      %469 = vmatprep.subr.mxu0 0.0
      %v470 = vand.u32 %v428, 4294901760
      %471 = vmatpush1.msra.mxu0 %v470
      %472 = vmatprep.subr.mxu0 0.0
      %v473 = vand.u32 %v429, 4294901760
      %474 = vmatpush1.msra.mxu0 %v473
      %475 = vmatprep.subr.mxu0 0.0
      %v476 = vand.u32 %v430, 4294901760
      %477 = vmatpush1.msra.mxu0 %v476
      %478 = vmatprep.subr.mxu0 0.0
      %v479 = vand.u32 %v431, 4294901760
      %480 = vmatpush1.msra.mxu0 %v479
      %481 = vmatprep.subr.mxu0 0.0
      %v482 = vand.u32 %v467, 4294901760
      %483 = vmatpush1.msra.mxu0 %v482
      %484 = vmatprep.subr.mxu0 0.0
      %485 = vmatpush1.msra.mxu0 0.0
      %486 = vmatprep.subr.mxu0 0.0
      %487 = vmatpush1.msra.mxu0 0.0
      %488 = vmatprep.subr.mxu0 0.0
      %489 = vmatpush1.msra.mxu0 0.0
      %490 = vmatprep.subr.mxu0 0.0
      %491 = vmatpush1.msra.mxu0 0.0
      %492 = vmatprep.subr.mxu0 0.0
      %493 = vmatpush1.msra.mxu0 0.0
      %494 = vmatprep.subr.mxu0 0.0
      %495 = vmatpush1.msra.mxu0 0.0
      %496 = vmatprep.subr.mxu0 0.0
      %497 = vmatpush1.msra.mxu0 0.0
      %498 = vmatprep.subr.mxu0 0.0
      %499 = vmatpush1.msra.mxu0 0.0
      %500 = vmatprep.subr.mxu0 0.0
      %501 = vmatpush1.msra.mxu0 0.0
      %502 = vmatprep.subr.mxu0 0.0
      %503 = vmatpush1.msra.mxu0 0.0
      %504 = vmatprep.subr.mxu0 0.0
      %505 = vmatpush1.msra.mxu0 0.0
      %506 = vmatprep.subr.mxu0 0.0
      %507 = vmatpush1.msra.mxu0 0.0
      %508 = vmatprep.subr.mxu0 0.0
      %509 = vmatpush1.msra.mxu0 0.0
      %510 = vmatprep.subr.mxu0 0.0
      %511 = vmatpush1.msra.mxu0 0.0
      %512 = vmatprep.subr.mxu0 0.0
      %513 = vmatpush1.msra.mxu0 0.0
      %514 = vmatprep.subr.mxu0 0.0
      %515 = vmatpush1.msra.mxu0 0.0
      %516 = vmatprep.subr.mxu0 0.0
      %517 = vmatpush1.msra.mxu0 0.0
      %518 = vmatprep.subr.mxu0 0.0
      %519 = vmatpush1.msra.mxu0 0.0
      %520 = vmatprep.subr.mxu0 0.0
      %521 = vmatpush1.msra.mxu0 0.0
      %522 = vmatprep.subr.mxu0 0.0
      %523 = vmatpush1.msra.mxu0 0.0
      %524 = vmatprep.subr.mxu0 0.0
      %525 = vmatpush1.msra.mxu0 0.0
      %526 = vmatprep.subr.mxu0 0.0
      %527 = vmatpush1.msra.mxu0 0.0
      %528 = vmatprep.subr.mxu0 0.0
      %529 = vmatpush1.msra.mxu0 0.0
      %530 = vmatprep.subr.mxu0 0.0
      %531 = vmatpush1.msra.mxu0 0.0
      %532 = vmatprep.subr.mxu0 0.0
      %533 = vmatpush1.msra.mxu0 0.0
      %534 = vmatprep.subr.mxu0 0.0
      %535 = vmatpush1.msra.mxu0 0.0
      %536 = vmatprep.subr.mxu0 0.0
      %537 = vmatpush1.msra.mxu0 0.0
      %538 = vmatprep.mubr.f32.mxu0 0.0
      %v539 = vand.u32 %v442, 4294901760
      %v540 = vsub.f32 %v442, %v539
      %v541 = vand.u32 %v540, 4294901760
      %v542 = vsub.f32 %v540, %v541
      %v543 = vand.u32 %v542, 4294901760
      %544 = vmatmul.mubr.f32.gmra.mrb[0].mxu0 %v543
      %v545 = vpop.f32.mrb[0].mxu0
      %v546 = vadd.f32 %v438, %v545
      %v547 = vpop.f32.mrb[0].mxu0
      %548 = vmatprep.mubr.f32.mxu0 0.0
      %v549 = vand.u32 %v445, 4294901760
      %v550 = vsub.f32 %v445, %v549
      %v551 = vand.u32 %v550, 4294901760
      %v552 = vsub.f32 %v550, %v551
      %v553 = vand.u32 %v552, 4294901760
      %554 = vmatmul.mubr.f32.gmra.mrb[0].mxu0 %v553
      %v555 = vpop.f32.mrb[0].mxu0
      %v556 = vadd.f32 %v438, %v555
      %v557 = vpop.f32.mrb[0].mxu0
      %558 = vmatprep.mubr.f32.mxu0 0.0
      %v559 = vand.u32 %v448, 4294901760
      %v560 = vsub.f32 %v448, %v559
      %v561 = vand.u32 %v560, 4294901760
      %v562 = vsub.f32 %v560, %v561
      %v563 = vand.u32 %v562, 4294901760
      %564 = vmatmul.mubr.f32.gmra.mrb[0].mxu0 %v563
      %v565 = vpop.f32.mrb[0].mxu0
      %v566 = vadd.f32 %v438, %v565
      %v567 = vpop.f32.mrb[0].mxu0
      %568 = vmatprep.mubr.f32.mxu0 0.0
      %v569 = vand.u32 %v451, 4294901760
      %v570 = vsub.f32 %v451, %v569
      %v571 = vand.u32 %v570, 4294901760
      %v572 = vsub.f32 %v570, %v571
      %v573 = vand.u32 %v572, 4294901760
      %574 = vmatmul.mubr.f32.gmra.mrb[0].mxu0 %v573
      %v575 = vpop.f32.mrb[0].mxu0
      %v576 = vadd.f32 %v438, %v575
      %v577 = vpop.f32.mrb[0].mxu0
      %578 = vmatprep.mubr.f32.mxu0 0.0
      %v579 = vand.u32 %v454, 4294901760
      %v580 = vsub.f32 %v454, %v579
      %v581 = vand.u32 %v580, 4294901760
      %v582 = vsub.f32 %v580, %v581
      %v583 = vand.u32 %v582, 4294901760
      %584 = vmatmul.mubr.f32.gmra.mrb[0].mxu0 %v583
      %v585 = vpop.f32.mrb[0].mxu0
      %v586 = vadd.f32 %v438, %v585
      %v587 = vpop.f32.mrb[0].mxu0
      %588 = vmatprep.mubr.f32.mxu0 0.0
      %v589 = vand.u32 %v457, 4294901760
      %v590 = vsub.f32 %v457, %v589
      %v591 = vand.u32 %v590, 4294901760
      %v592 = vsub.f32 %v590, %v591
      %v593 = vand.u32 %v592, 4294901760
      %594 = vmatmul.mubr.f32.gmra.mrb[0].mxu0 %v593
      %v595 = vpop.f32.mrb[0].mxu0
      %v596 = vadd.f32 %v438, %v595
      %v597 = vpop.f32.mrb[0].mxu0
      %598 = vmatprep.mubr.f32.mxu0 0.0
      %v599 = vand.u32 %v460, 4294901760
      %v600 = vsub.f32 %v460, %v599
      %v601 = vand.u32 %v600, 4294901760
      %v602 = vsub.f32 %v600, %v601
      %v603 = vand.u32 %v602, 4294901760
      %604 = vmatmul.mubr.f32.gmra.mrb[0].mxu0 %v603
      %v605 = vpop.f32.mrb[0].mxu0
      %v606 = vadd.f32 %v438, %v605
      %v607 = vpop.f32.mrb[0].mxu0
      %608 = vmatprep.mubr.f32.mxu0 0.0
      %v609 = vand.u32 %v463, 4294901760
      %v610 = vsub.f32 %v463, %v609
      %v611 = vand.u32 %v610, 4294901760
      %v612 = vsub.f32 %v610, %v611
      %v613 = vand.u32 %v612, 4294901760
      %614 = vmatmul.mubr.f32.gmra.mrb[0].mxu0 %v613
      %v615 = vpop.f32.mrb[0].mxu0
      %v616 = vadd.f32 %v438, %v615
      %v617 = vpop.f32.mrb[0].mxu0
      %618 = vdwg.mxu0
      %619 = vmatprep.subr.mxu0 0.0
      %v620 = vand.u32 %v428, 4294901760
      %v621 = vsub.f32 %v428, %v620
      %v622 = vand.u32 %v621, 4294901760
      %v623 = vsub.f32 %v621, %v622
      %v624 = vand.u32 %v623, 4294901760
      %625 = vmatpush1.msra.mxu0 %v624
      %626 = vmatprep.subr.mxu0 0.0
      %v627 = vand.u32 %v429, 4294901760
      %v628 = vsub.f32 %v429, %v627
      %v629 = vand.u32 %v628, 4294901760
      %v630 = vsub.f32 %v628, %v629
      %v631 = vand.u32 %v630, 4294901760
      %632 = vmatpush1.msra.mxu0 %v631
      %633 = vmatprep.subr.mxu0 0.0
      %v634 = vand.u32 %v430, 4294901760
      %v635 = vsub.f32 %v430, %v634
      %v636 = vand.u32 %v635, 4294901760
      %v637 = vsub.f32 %v635, %v636
      %v638 = vand.u32 %v637, 4294901760
      %639 = vmatpush1.msra.mxu0 %v638
      %640 = vmatprep.subr.mxu0 0.0
      %v641 = vand.u32 %v431, 4294901760
      %v642 = vsub.f32 %v431, %v641
      %v643 = vand.u32 %v642, 4294901760
      %v644 = vsub.f32 %v642, %v643
      %v645 = vand.u32 %v644, 4294901760
      %646 = vmatpush1.msra.mxu0 %v645
      %647 = vmatprep.subr.mxu0 0.0
      %v648 = vand.u32 %v467, 4294901760
      %v649 = vsub.f32 %v467, %v648
      %v650 = vand.u32 %v649, 4294901760
      %v651 = vsub.f32 %v649, %v650
      %v652 = vand.u32 %v651, 4294901760
      %653 = vmatpush1.msra.mxu0 %v652
      %654 = vmatprep.subr.mxu0 0.0
      %655 = vmatpush1.msra.mxu0 0.0
      %656 = vmatprep.subr.mxu0 0.0
      %657 = vmatpush1.msra.mxu0 0.0
      %658 = vmatprep.subr.mxu0 0.0
      %659 = vmatpush1.msra.mxu0 0.0
      %660 = vmatprep.subr.mxu0 0.0
      %661 = vmatpush1.msra.mxu0 0.0
      %662 = vmatprep.subr.mxu0 0.0
      %663 = vmatpush1.msra.mxu0 0.0
      %664 = vmatprep.subr.mxu0 0.0
      %665 = vmatpush1.msra.mxu0 0.0
      %666 = vmatprep.subr.mxu0 0.0
      %667 = vmatpush1.msra.mxu0 0.0
      %668 = vmatprep.subr.mxu0 0.0
      %669 = vmatpush1.msra.mxu0 0.0
      %670 = vmatprep.subr.mxu0 0.0
      %671 = vmatpush1.msra.mxu0 0.0
      %672 = vmatprep.subr.mxu0 0.0
      %673 = vmatpush1.msra.mxu0 0.0
      %674 = vmatprep.subr.mxu0 0.0
      %675 = vmatpush1.msra.mxu0 0.0
      %676 = vmatprep.subr.mxu0 0.0
      %677 = vmatpush1.msra.mxu0 0.0
      %678 = vmatprep.subr.mxu0 0.0
      %679 = vmatpush1.msra.mxu0 0.0
      %680 = vmatprep.subr.mxu0 0.0
      %681 = vmatpush1.msra.mxu0 0.0
      %682 = vmatprep.subr.mxu0 0.0
      %683 = vmatpush1.msra.mxu0 0.0
      %684 = vmatprep.subr.mxu0 0.0
      %685 = vmatpush1.msra.mxu0 0.0
      %686 = vmatprep.subr.mxu0 0.0
      %687 = vmatpush1.msra.mxu0 0.0
      %688 = vmatprep.subr.mxu0 0.0
      %689 = vmatpush1.msra.mxu0 0.0
      %690 = vmatprep.subr.mxu0 0.0
      %691 = vmatpush1.msra.mxu0 0.0
      %692 = vmatprep.subr.mxu0 0.0
      %693 = vmatpush1.msra.mxu0 0.0
      %694 = vmatprep.subr.mxu0 0.0
      %695 = vmatpush1.msra.mxu0 0.0
      %696 = vmatprep.subr.mxu0 0.0
      %697 = vmatpush1.msra.mxu0 0.0
      %698 = vmatprep.subr.mxu0 0.0
      %699 = vmatpush1.msra.mxu0 0.0
      %700 = vmatprep.subr.mxu0 0.0
      %701 = vmatpush1.msra.mxu0 0.0
      %702 = vmatprep.subr.mxu0 0.0
      %703 = vmatpush1.msra.mxu0 0.0
      %704 = vmatprep.subr.mxu0 0.0
      %705 = vmatpush1.msra.mxu0 0.0
      %706 = vmatprep.subr.mxu0 0.0
      %707 = vmatpush1.msra.mxu0 0.0
      %708 = vmatprep.mubr.f32.mxu0 0.0
      %v709 = vand.u32 %v442, 4294901760
      %710 = vmatmul.mubr.f32.gmra.mrb[0].mxu0 %v709
      %v711 = vpop.f32.mrb[0].mxu0
      %v712 = vadd.f32 %v546, %v711
      %v713 = vpop.f32.mrb[0].mxu0
      %714 = vmatprep.mubr.f32.mxu0 0.0
      %v715 = vand.u32 %v445, 4294901760
      %716 = vmatmul.mubr.f32.gmra.mrb[0].mxu0 %v715
      %v717 = vpop.f32.mrb[0].mxu0
      %v718 = vadd.f32 %v556, %v717
      %v719 = vpop.f32.mrb[0].mxu0
      %720 = vmatprep.mubr.f32.mxu0 0.0
      %v721 = vand.u32 %v448, 4294901760
      %722 = vmatmul.mubr.f32.gmra.mrb[0].mxu0 %v721
      %v723 = vpop.f32.mrb[0].mxu0
      %v724 = vadd.f32 %v566, %v723
      %v725 = vpop.f32.mrb[0].mxu0
      %726 = vmatprep.mubr.f32.mxu0 0.0
      %v727 = vand.u32 %v451, 4294901760
      %728 = vmatmul.mubr.f32.gmra.mrb[0].mxu0 %v727
      %v729 = vpop.f32.mrb[0].mxu0
      %v730 = vadd.f32 %v576, %v729
      %v731 = vpop.f32.mrb[0].mxu0
      %732 = vmatprep.mubr.f32.mxu0 0.0
      %v733 = vand.u32 %v454, 4294901760
      %734 = vmatmul.mubr.f32.gmra.mrb[0].mxu0 %v733
      %v735 = vpop.f32.mrb[0].mxu0
      %v736 = vadd.f32 %v586, %v735
      %v737 = vpop.f32.mrb[0].mxu0
      %738 = vmatprep.mubr.f32.mxu0 0.0
      %v739 = vand.u32 %v457, 4294901760
      %740 = vmatmul.mubr.f32.gmra.mrb[0].mxu0 %v739
      %v741 = vpop.f32.mrb[0].mxu0
      %v742 = vadd.f32 %v596, %v741
      %v743 = vpop.f32.mrb[0].mxu0
      %744 = vmatprep.mubr.f32.mxu0 0.0
      %v745 = vand.u32 %v460, 4294901760
      %746 = vmatmul.mubr.f32.gmra.mrb[0].mxu0 %v745
      %v747 = vpop.f32.mrb[0].mxu0
      %v748 = vadd.f32 %v606, %v747
      %v749 = vpop.f32.mrb[0].mxu0
      %750 = vmatprep.mubr.f32.mxu0 0.0
      %v751 = vand.u32 %v463, 4294901760
      %752 = vmatmul.mubr.f32.gmra.mrb[0].mxu0 %v751
      %v753 = vpop.f32.mrb[0].mxu0
      %v754 = vadd.f32 %v616, %v753
      %v755 = vpop.f32.mrb[0].mxu0
      %756 = vdwg.mxu0
      %757 = vmatprep.subr.mxu0 0.0
      %v758 = vand.u32 %v428, 4294901760
      %v759 = vsub.f32 %v428, %v758
      %760 = vmatpush1.msra.mxu0 %v759
      %761 = vmatprep.subr.mxu0 0.0
      %v762 = vand.u32 %v429, 4294901760
      %v763 = vsub.f32 %v429, %v762
      %764 = vmatpush1.msra.mxu0 %v763
      %765 = vmatprep.subr.mxu0 0.0
      %v766 = vand.u32 %v430, 4294901760
      %v767 = vsub.f32 %v430, %v766
      %768 = vmatpush1.msra.mxu0 %v767
      %769 = vmatprep.subr.mxu0 0.0
      %v770 = vand.u32 %v431, 4294901760
      %v771 = vsub.f32 %v431, %v770
      %772 = vmatpush1.msra.mxu0 %v771
      %773 = vmatprep.subr.mxu0 0.0
      %v774 = vand.u32 %v467, 4294901760
      %v775 = vsub.f32 %v467, %v774
      %776 = vmatpush1.msra.mxu0 %v775
      %777 = vmatprep.subr.mxu0 0.0
      %778 = vmatpush1.msra.mxu0 0.0
      %779 = vmatprep.subr.mxu0 0.0
      %780 = vmatpush1.msra.mxu0 0.0
      %781 = vmatprep.subr.mxu0 0.0
      %782 = vmatpush1.msra.mxu0 0.0
      %783 = vmatprep.subr.mxu0 0.0
      %784 = vmatpush1.msra.mxu0 0.0
      %785 = vmatprep.subr.mxu0 0.0
      %786 = vmatpush1.msra.mxu0 0.0
      %787 = vmatprep.subr.mxu0 0.0
      %788 = vmatpush1.msra.mxu0 0.0
      %789 = vmatprep.subr.mxu0 0.0
      %790 = vmatpush1.msra.mxu0 0.0
      %791 = vmatprep.subr.mxu0 0.0
      %792 = vmatpush1.msra.mxu0 0.0
      %793 = vmatprep.subr.mxu0 0.0
      %794 = vmatpush1.msra.mxu0 0.0
      %795 = vmatprep.subr.mxu0 0.0
      %796 = vmatpush1.msra.mxu0 0.0
      %797 = vmatprep.subr.mxu0 0.0
      %798 = vmatpush1.msra.mxu0 0.0
      %799 = vmatprep.subr.mxu0 0.0
      %800 = vmatpush1.msra.mxu0 0.0
      %801 = vmatprep.subr.mxu0 0.0
      %802 = vmatpush1.msra.mxu0 0.0
      %803 = vmatprep.subr.mxu0 0.0
      %804 = vmatpush1.msra.mxu0 0.0
      %805 = vmatprep.subr.mxu0 0.0
      %806 = vmatpush1.msra.mxu0 0.0
      %807 = vmatprep.subr.mxu0 0.0
      %808 = vmatpush1.msra.mxu0 0.0
      %809 = vmatprep.subr.mxu0 0.0
      %810 = vmatpush1.msra.mxu0 0.0
      %811 = vmatprep.subr.mxu0 0.0
      %812 = vmatpush1.msra.mxu0 0.0
      %813 = vmatprep.subr.mxu0 0.0
      %814 = vmatpush1.msra.mxu0 0.0
      %815 = vmatprep.subr.mxu0 0.0
      %816 = vmatpush1.msra.mxu0 0.0
      %817 = vmatprep.subr.mxu0 0.0
      %818 = vmatpush1.msra.mxu0 0.0
      %819 = vmatprep.subr.mxu0 0.0
      %820 = vmatpush1.msra.mxu0 0.0
      %821 = vmatprep.subr.mxu0 0.0
      %822 = vmatpush1.msra.mxu0 0.0
      %823 = vmatprep.subr.mxu0 0.0
      %824 = vmatpush1.msra.mxu0 0.0
      %825 = vmatprep.subr.mxu0 0.0
      %826 = vmatpush1.msra.mxu0 0.0
      %827 = vmatprep.subr.mxu0 0.0
      %828 = vmatpush1.msra.mxu0 0.0
      %829 = vmatprep.subr.mxu0 0.0
      %830 = vmatpush1.msra.mxu0 0.0
      %831 = vmatprep.mubr.f32.mxu0 0.0
      %v832 = vand.u32 %v442, 4294901760
      %v833 = vsub.f32 %v442, %v832
      %834 = vmatmul.mubr.f32.gmra.mrb[0].mxu0 %v833
      %v835 = vpop.f32.mrb[0].mxu0
      %v836 = vadd.f32 %v712, %v835
      %v837 = vpop.f32.mrb[0].mxu0
      %838 = vmatprep.mubr.f32.mxu0 0.0
      %v839 = vand.u32 %v445, 4294901760
      %v840 = vsub.f32 %v445, %v839
      %841 = vmatmul.mubr.f32.gmra.mrb[0].mxu0 %v840
      %v842 = vpop.f32.mrb[0].mxu0
      %v843 = vadd.f32 %v718, %v842
      %v844 = vpop.f32.mrb[0].mxu0
      %845 = vmatprep.mubr.f32.mxu0 0.0
      %v846 = vand.u32 %v448, 4294901760
      %v847 = vsub.f32 %v448, %v846
      %848 = vmatmul.mubr.f32.gmra.mrb[0].mxu0 %v847
      %v849 = vpop.f32.mrb[0].mxu0
      %v850 = vadd.f32 %v724, %v849
      %v851 = vpop.f32.mrb[0].mxu0
      %852 = vmatprep.mubr.f32.mxu0 0.0
      %v853 = vand.u32 %v451, 4294901760
      %v854 = vsub.f32 %v451, %v853
      %855 = vmatmul.mubr.f32.gmra.mrb[0].mxu0 %v854
      %v856 = vpop.f32.mrb[0].mxu0
      %v857 = vadd.f32 %v730, %v856
      %v858 = vpop.f32.mrb[0].mxu0
      %859 = vmatprep.mubr.f32.mxu0 0.0
      %v860 = vand.u32 %v454, 4294901760
      %v861 = vsub.f32 %v454, %v860
      %862 = vmatmul.mubr.f32.gmra.mrb[0].mxu0 %v861
      %v863 = vpop.f32.mrb[0].mxu0
      %v864 = vadd.f32 %v736, %v863
      %v865 = vpop.f32.mrb[0].mxu0
      %866 = vmatprep.mubr.f32.mxu0 0.0
      %v867 = vand.u32 %v457, 4294901760
      %v868 = vsub.f32 %v457, %v867
      %869 = vmatmul.mubr.f32.gmra.mrb[0].mxu0 %v868
      %v870 = vpop.f32.mrb[0].mxu0
      %v871 = vadd.f32 %v742, %v870
      %v872 = vpop.f32.mrb[0].mxu0
      %873 = vmatprep.mubr.f32.mxu0 0.0
      %v874 = vand.u32 %v460, 4294901760
      %v875 = vsub.f32 %v460, %v874
      %876 = vmatmul.mubr.f32.gmra.mrb[0].mxu0 %v875
      %v877 = vpop.f32.mrb[0].mxu0
      %v878 = vadd.f32 %v748, %v877
      %v879 = vpop.f32.mrb[0].mxu0
      %880 = vmatprep.mubr.f32.mxu0 0.0
      %v881 = vand.u32 %v463, 4294901760
      %v882 = vsub.f32 %v463, %v881
      %883 = vmatmul.mubr.f32.gmra.mrb[0].mxu0 %v882
      %v884 = vpop.f32.mrb[0].mxu0
      %v885 = vadd.f32 %v754, %v884
      %v886 = vpop.f32.mrb[0].mxu0
      %887 = vdwg.mxu0
      %888 = vmatprep.subr.mxu0 0.0
      %v889 = vand.u32 %v428, 4294901760
      %890 = vmatpush1.msra.mxu0 %v889
      %891 = vmatprep.subr.mxu0 0.0
      %v892 = vand.u32 %v429, 4294901760
      %893 = vmatpush1.msra.mxu0 %v892
      %894 = vmatprep.subr.mxu0 0.0
      %v895 = vand.u32 %v430, 4294901760
      %896 = vmatpush1.msra.mxu0 %v895
      %897 = vmatprep.subr.mxu0 0.0
      %v898 = vand.u32 %v431, 4294901760
      %899 = vmatpush1.msra.mxu0 %v898
      %900 = vmatprep.subr.mxu0 0.0
      %v901 = vand.u32 %v467, 4294901760
      %902 = vmatpush1.msra.mxu0 %v901
      %903 = vmatprep.subr.mxu0 0.0
      %904 = vmatpush1.msra.mxu0 0.0
      %905 = vmatprep.subr.mxu0 0.0
      %906 = vmatpush1.msra.mxu0 0.0
      %907 = vmatprep.subr.mxu0 0.0
      %908 = vmatpush1.msra.mxu0 0.0
      %909 = vmatprep.subr.mxu0 0.0
      %910 = vmatpush1.msra.mxu0 0.0
      %911 = vmatprep.subr.mxu0 0.0
      %912 = vmatpush1.msra.mxu0 0.0
      %913 = vmatprep.subr.mxu0 0.0
      %914 = vmatpush1.msra.mxu0 0.0
      %915 = vmatprep.subr.mxu0 0.0
      %916 = vmatpush1.msra.mxu0 0.0
      %917 = vmatprep.subr.mxu0 0.0
      %918 = vmatpush1.msra.mxu0 0.0
      %919 = vmatprep.subr.mxu0 0.0
      %920 = vmatpush1.msra.mxu0 0.0
      %921 = vmatprep.subr.mxu0 0.0
      %922 = vmatpush1.msra.mxu0 0.0
      %923 = vmatprep.subr.mxu0 0.0
      %924 = vmatpush1.msra.mxu0 0.0
      %925 = vmatprep.subr.mxu0 0.0
      %926 = vmatpush1.msra.mxu0 0.0
      %927 = vmatprep.subr.mxu0 0.0
      %928 = vmatpush1.msra.mxu0 0.0
      %929 = vmatprep.subr.mxu0 0.0
      %930 = vmatpush1.msra.mxu0 0.0
      %931 = vmatprep.subr.mxu0 0.0
      %932 = vmatpush1.msra.mxu0 0.0
      %933 = vmatprep.subr.mxu0 0.0
      %934 = vmatpush1.msra.mxu0 0.0
      %935 = vmatprep.subr.mxu0 0.0
      %936 = vmatpush1.msra.mxu0 0.0
      %937 = vmatprep.subr.mxu0 0.0
      %938 = vmatpush1.msra.mxu0 0.0
      %939 = vmatprep.subr.mxu0 0.0
      %940 = vmatpush1.msra.mxu0 0.0
      %941 = vmatprep.subr.mxu0 0.0
      %942 = vmatpush1.msra.mxu0 0.0
      %943 = vmatprep.subr.mxu0 0.0
      %944 = vmatpush1.msra.mxu0 0.0
      %945 = vmatprep.subr.mxu0 0.0
      %946 = vmatpush1.msra.mxu0 0.0
      %947 = vmatprep.subr.mxu0 0.0
      %948 = vmatpush1.msra.mxu0 0.0
      %949 = vmatprep.subr.mxu0 0.0
      %950 = vmatpush1.msra.mxu0 0.0
      %951 = vmatprep.subr.mxu0 0.0
      %952 = vmatpush1.msra.mxu0 0.0
      %953 = vmatprep.subr.mxu0 0.0
      %954 = vmatpush1.msra.mxu0 0.0
      %955 = vmatprep.subr.mxu0 0.0
      %956 = vmatpush1.msra.mxu0 0.0
      %957 = vmatprep.mubr.f32.mxu0 0.0
      %v958 = vand.u32 %v442, 4294901760
      %v959 = vsub.f32 %v442, %v958
      %v960 = vand.u32 %v959, 4294901760
      %961 = vmatmul.mubr.f32.gmra.mrb[0].mxu0 %v960
      %v962 = vpop.f32.mrb[0].mxu0
      %v963 = vadd.f32 %v836, %v962
      %v964 = vpop.f32.mrb[0].mxu0
      %965 = vmatprep.mubr.f32.mxu0 0.0
      %v966 = vand.u32 %v445, 4294901760
      %v967 = vsub.f32 %v445, %v966
      %v968 = vand.u32 %v967, 4294901760
      %969 = vmatmul.mubr.f32.gmra.mrb[0].mxu0 %v968
      %v970 = vpop.f32.mrb[0].mxu0
      %v971 = vadd.f32 %v843, %v970
      %v972 = vpop.f32.mrb[0].mxu0
      %973 = vmatprep.mubr.f32.mxu0 0.0
      %v974 = vand.u32 %v448, 4294901760
      %v975 = vsub.f32 %v448, %v974
      %v976 = vand.u32 %v975, 4294901760
      %977 = vmatmul.mubr.f32.gmra.mrb[0].mxu0 %v976
      %v978 = vpop.f32.mrb[0].mxu0
      %v979 = vadd.f32 %v850, %v978
      %v980 = vpop.f32.mrb[0].mxu0
      %981 = vmatprep.mubr.f32.mxu0 0.0
      %v982 = vand.u32 %v451, 4294901760
      %v983 = vsub.f32 %v451, %v982
      %v984 = vand.u32 %v983, 4294901760
      %985 = vmatmul.mubr.f32.gmra.mrb[0].mxu0 %v984
      %v986 = vpop.f32.mrb[0].mxu0
      %v987 = vadd.f32 %v857, %v986
      %v988 = vpop.f32.mrb[0].mxu0
      %989 = vmatprep.mubr.f32.mxu0 0.0
      %v990 = vand.u32 %v454, 4294901760
      %v991 = vsub.f32 %v454, %v990
      %v992 = vand.u32 %v991, 4294901760
      %993 = vmatmul.mubr.f32.gmra.mrb[0].mxu0 %v992
      %v994 = vpop.f32.mrb[0].mxu0
      %v995 = vadd.f32 %v864, %v994
      %v996 = vpop.f32.mrb[0].mxu0
      %997 = vmatprep.mubr.f32.mxu0 0.0
      %v998 = vand.u32 %v457, 4294901760
      %v999 = vsub.f32 %v457, %v998
      %v1000 = vand.u32 %v999, 4294901760
      %1001 = vmatmul.mubr.f32.gmra.mrb[0].mxu0 %v1000
      %v1002 = vpop.f32.mrb[0].mxu0
      %v1003 = vadd.f32 %v871, %v1002
      %v1004 = vpop.f32.mrb[0].mxu0
      %1005 = vmatprep.mubr.f32.mxu0 0.0
      %v1006 = vand.u32 %v460, 4294901760
      %v1007 = vsub.f32 %v460, %v1006
      %v1008 = vand.u32 %v1007, 4294901760
      %1009 = vmatmul.mubr.f32.gmra.mrb[0].mxu0 %v1008
      %v1010 = vpop.f32.mrb[0].mxu0
      %v1011 = vadd.f32 %v878, %v1010
      %v1012 = vpop.f32.mrb[0].mxu0
      %1013 = vmatprep.mubr.f32.mxu0 0.0
      %v1014 = vand.u32 %v463, 4294901760
      %v1015 = vsub.f32 %v463, %v1014
      %v1016 = vand.u32 %v1015, 4294901760
      %1017 = vmatmul.mubr.f32.gmra.mrb[0].mxu0 %v1016
      %v1018 = vpop.f32.mrb[0].mxu0
      %v1019 = vadd.f32 %v885, %v1018
      %v1020 = vpop.f32.mrb[0].mxu0
      %1021 = vdwg.mxu0
      %1022 = vmatprep.subr.mxu0 0.0
      %v1023 = vand.u32 %v428, 4294901760
      %v1024 = vsub.f32 %v428, %v1023
      %v1025 = vand.u32 %v1024, 4294901760
      %1026 = vmatpush1.msra.mxu0 %v1025
      %1027 = vmatprep.subr.mxu0 0.0
      %v1028 = vand.u32 %v429, 4294901760
      %v1029 = vsub.f32 %v429, %v1028
      %v1030 = vand.u32 %v1029, 4294901760
      %1031 = vmatpush1.msra.mxu0 %v1030
      %1032 = vmatprep.subr.mxu0 0.0
      %v1033 = vand.u32 %v430, 4294901760
      %v1034 = vsub.f32 %v430, %v1033
      %v1035 = vand.u32 %v1034, 4294901760
      %1036 = vmatpush1.msra.mxu0 %v1035
      %1037 = vmatprep.subr.mxu0 0.0
      %v1038 = vand.u32 %v431, 4294901760
      %v1039 = vsub.f32 %v431, %v1038
      %v1040 = vand.u32 %v1039, 4294901760
      %1041 = vmatpush1.msra.mxu0 %v1040
      %1042 = vmatprep.subr.mxu0 0.0
      %v1043 = vand.u32 %v467, 4294901760
      %v1044 = vsub.f32 %v467, %v1043
      %v1045 = vand.u32 %v1044, 4294901760
      %1046 = vmatpush1.msra.mxu0 %v1045
      %1047 = vmatprep.subr.mxu0 0.0
      %1048 = vmatpush1.msra.mxu0 0.0
      %1049 = vmatprep.subr.mxu0 0.0
      %1050 = vmatpush1.msra.mxu0 0.0
      %1051 = vmatprep.subr.mxu0 0.0
      %1052 = vmatpush1.msra.mxu0 0.0
      %1053 = vmatprep.subr.mxu0 0.0
      %1054 = vmatpush1.msra.mxu0 0.0
      %1055 = vmatprep.subr.mxu0 0.0
      %1056 = vmatpush1.msra.mxu0 0.0
      %1057 = vmatprep.subr.mxu0 0.0
      %1058 = vmatpush1.msra.mxu0 0.0
      %1059 = vmatprep.subr.mxu0 0.0
      %1060 = vmatpush1.msra.mxu0 0.0
      %1061 = vmatprep.subr.mxu0 0.0
      %1062 = vmatpush1.msra.mxu0 0.0
      %1063 = vmatprep.subr.mxu0 0.0
      %1064 = vmatpush1.msra.mxu0 0.0
      %1065 = vmatprep.subr.mxu0 0.0
      %1066 = vmatpush1.msra.mxu0 0.0
      %1067 = vmatprep.subr.mxu0 0.0
      %1068 = vmatpush1.msra.mxu0 0.0
      %1069 = vmatprep.subr.mxu0 0.0
      %1070 = vmatpush1.msra.mxu0 0.0
      %1071 = vmatprep.subr.mxu0 0.0
      %1072 = vmatpush1.msra.mxu0 0.0
      %1073 = vmatprep.subr.mxu0 0.0
      %1074 = vmatpush1.msra.mxu0 0.0
      %1075 = vmatprep.subr.mxu0 0.0
      %1076 = vmatpush1.msra.mxu0 0.0
      %1077 = vmatprep.subr.mxu0 0.0
      %1078 = vmatpush1.msra.mxu0 0.0
      %1079 = vmatprep.subr.mxu0 0.0
      %1080 = vmatpush1.msra.mxu0 0.0
      %1081 = vmatprep.subr.mxu0 0.0
      %1082 = vmatpush1.msra.mxu0 0.0
      %1083 = vmatprep.subr.mxu0 0.0
      %1084 = vmatpush1.msra.mxu0 0.0
      %1085 = vmatprep.subr.mxu0 0.0
      %1086 = vmatpush1.msra.mxu0 0.0
      %1087 = vmatprep.subr.mxu0 0.0
      %1088 = vmatpush1.msra.mxu0 0.0
      %1089 = vmatprep.subr.mxu0 0.0
      %1090 = vmatpush1.msra.mxu0 0.0
      %1091 = vmatprep.subr.mxu0 0.0
      %1092 = vmatpush1.msra.mxu0 0.0
      %1093 = vmatprep.subr.mxu0 0.0
      %1094 = vmatpush1.msra.mxu0 0.0
      %1095 = vmatprep.subr.mxu0 0.0
      %1096 = vmatpush1.msra.mxu0 0.0
      %1097 = vmatprep.subr.mxu0 0.0
      %1098 = vmatpush1.msra.mxu0 0.0
      %1099 = vmatprep.subr.mxu0 0.0
      %1100 = vmatpush1.msra.mxu0 0.0
      %1101 = vmatprep.mubr.f32.mxu0 0.0
      %v1102 = vand.u32 %v442, 4294901760
      %1103 = vmatmul.mubr.f32.gmra.mrb[0].mxu0 %v1102
      %v1104 = vpop.f32.mrb[0].mxu0
      %v1105 = vadd.f32 %v963, %v1104
      %v1106 = vpop.f32.mrb[0].mxu0
      %1107 = vmatprep.mubr.f32.mxu0 0.0
      %v1108 = vand.u32 %v445, 4294901760
      %1109 = vmatmul.mubr.f32.gmra.mrb[0].mxu0 %v1108
      %v1110 = vpop.f32.mrb[0].mxu0
      %v1111 = vadd.f32 %v971, %v1110
      %v1112 = vpop.f32.mrb[0].mxu0
      %1113 = vmatprep.mubr.f32.mxu0 0.0
      %v1114 = vand.u32 %v448, 4294901760
      %1115 = vmatmul.mubr.f32.gmra.mrb[0].mxu0 %v1114
      %v1116 = vpop.f32.mrb[0].mxu0
      %v1117 = vadd.f32 %v979, %v1116
      %v1118 = vpop.f32.mrb[0].mxu0
      %1119 = vmatprep.mubr.f32.mxu0 0.0
      %v1120 = vand.u32 %v451, 4294901760
      %1121 = vmatmul.mubr.f32.gmra.mrb[0].mxu0 %v1120
      %v1122 = vpop.f32.mrb[0].mxu0
      %v1123 = vadd.f32 %v987, %v1122
      %v1124 = vpop.f32.mrb[0].mxu0
      %1125 = vmatprep.mubr.f32.mxu0 0.0
      %v1126 = vand.u32 %v454, 4294901760
      %1127 = vmatmul.mubr.f32.gmra.mrb[0].mxu0 %v1126
      %v1128 = vpop.f32.mrb[0].mxu0
      %v1129 = vadd.f32 %v995, %v1128
      %v1130 = vpop.f32.mrb[0].mxu0
      %1131 = vmatprep.mubr.f32.mxu0 0.0
      %v1132 = vand.u32 %v457, 4294901760
      %1133 = vmatmul.mubr.f32.gmra.mrb[0].mxu0 %v1132
      %v1134 = vpop.f32.mrb[0].mxu0
      %v1135 = vadd.f32 %v1003, %v1134
      %v1136 = vpop.f32.mrb[0].mxu0
      %1137 = vmatprep.mubr.f32.mxu0 0.0
      %v1138 = vand.u32 %v460, 4294901760
      %1139 = vmatmul.mubr.f32.gmra.mrb[0].mxu0 %v1138
      %v1140 = vpop.f32.mrb[0].mxu0
      %v1141 = vadd.f32 %v1011, %v1140
      %v1142 = vpop.f32.mrb[0].mxu0
      %1143 = vmatprep.mubr.f32.mxu0 0.0
      %v1144 = vand.u32 %v463, 4294901760
      %1145 = vmatmul.mubr.f32.gmra.mrb[0].mxu0 %v1144
      %v1146 = vpop.f32.mrb[0].mxu0
      %v1147 = vadd.f32 %v1019, %v1146
      %v1148 = vpop.f32.mrb[0].mxu0
      %1149 = vdwg.mxu0
      %1150 = vmatprep.subr.mxu0 0.0
      %v1151 = vand.u32 %v428, 4294901760
      %1152 = vmatpush1.msra.mxu0 %v1151
      %1153 = vmatprep.subr.mxu0 0.0
      %v1154 = vand.u32 %v429, 4294901760
      %1155 = vmatpush1.msra.mxu0 %v1154
      %1156 = vmatprep.subr.mxu0 0.0
      %v1157 = vand.u32 %v430, 4294901760
      %1158 = vmatpush1.msra.mxu0 %v1157
      %1159 = vmatprep.subr.mxu0 0.0
      %v1160 = vand.u32 %v431, 4294901760
      %1161 = vmatpush1.msra.mxu0 %v1160
      %1162 = vmatprep.subr.mxu0 0.0
      %v1163 = vand.u32 %v467, 4294901760
      %1164 = vmatpush1.msra.mxu0 %v1163
      %1165 = vmatprep.subr.mxu0 0.0
      %1166 = vmatpush1.msra.mxu0 0.0
      %1167 = vmatprep.subr.mxu0 0.0
      %1168 = vmatpush1.msra.mxu0 0.0
      %1169 = vmatprep.subr.mxu0 0.0
      %1170 = vmatpush1.msra.mxu0 0.0
      %1171 = vmatprep.subr.mxu0 0.0
      %1172 = vmatpush1.msra.mxu0 0.0
      %1173 = vmatprep.subr.mxu0 0.0
      %1174 = vmatpush1.msra.mxu0 0.0
      %1175 = vmatprep.subr.mxu0 0.0
      %1176 = vmatpush1.msra.mxu0 0.0
      %1177 = vmatprep.subr.mxu0 0.0
      %1178 = vmatpush1.msra.mxu0 0.0
      %1179 = vmatprep.subr.mxu0 0.0
      %1180 = vmatpush1.msra.mxu0 0.0
      %1181 = vmatprep.subr.mxu0 0.0
      %1182 = vmatpush1.msra.mxu0 0.0
      %1183 = vmatprep.subr.mxu0 0.0
      %1184 = vmatpush1.msra.mxu0 0.0
      %1185 = vmatprep.subr.mxu0 0.0
      %1186 = vmatpush1.msra.mxu0 0.0
      %1187 = vmatprep.subr.mxu0 0.0
      %1188 = vmatpush1.msra.mxu0 0.0
      %1189 = vmatprep.subr.mxu0 0.0
      %1190 = vmatpush1.msra.mxu0 0.0
      %1191 = vmatprep.subr.mxu0 0.0
      %1192 = vmatpush1.msra.mxu0 0.0
      %1193 = vmatprep.subr.mxu0 0.0
      %1194 = vmatpush1.msra.mxu0 0.0
      %1195 = vmatprep.subr.mxu0 0.0
      %1196 = vmatpush1.msra.mxu0 0.0
      %1197 = vmatprep.subr.mxu0 0.0
      %1198 = vmatpush1.msra.mxu0 0.0
      %1199 = vmatprep.subr.mxu0 0.0
      %1200 = vmatpush1.msra.mxu0 0.0
      %1201 = vmatprep.subr.mxu0 0.0
      %1202 = vmatpush1.msra.mxu0 0.0
      %1203 = vmatprep.subr.mxu0 0.0
      %1204 = vmatpush1.msra.mxu0 0.0
      %1205 = vmatprep.subr.mxu0 0.0
      %1206 = vmatpush1.msra.mxu0 0.0
      %1207 = vmatprep.subr.mxu0 0.0
      %1208 = vmatpush1.msra.mxu0 0.0
      %1209 = vmatprep.subr.mxu0 0.0
      %1210 = vmatpush1.msra.mxu0 0.0
      %1211 = vmatprep.subr.mxu0 0.0
      %1212 = vmatpush1.msra.mxu0 0.0
      %1213 = vmatprep.subr.mxu0 0.0
      %1214 = vmatpush1.msra.mxu0 0.0
      %1215 = vmatprep.subr.mxu0 0.0
      %1216 = vmatpush1.msra.mxu0 0.0
      %1217 = vmatprep.subr.mxu0 0.0
      %1218 = vmatpush1.msra.mxu0 0.0
      %1219 = vmatprep.mubr.f32.mxu0 0.0
      %v1220 = vand.u32 %v442, 4294901760
      %1221 = vmatmul.mubr.f32.gmra.mrb[0].mxu0 %v1220
      %v1222 = vpop.f32.mrb[0].mxu0
      %v1223 = vadd.f32 %v1105, %v1222
      %v1224 = vpop.f32.mrb[0].mxu0
      %1225 = vmatprep.mubr.f32.mxu0 0.0
      %v1226 = vand.u32 %v445, 4294901760
      %1227 = vmatmul.mubr.f32.gmra.mrb[0].mxu0 %v1226
      %v1228 = vpop.f32.mrb[0].mxu0
      %v1229 = vadd.f32 %v1111, %v1228
      %v1230 = vpop.f32.mrb[0].mxu0
      %1231 = vmatprep.mubr.f32.mxu0 0.0
      %v1232 = vand.u32 %v448, 4294901760
      %1233 = vmatmul.mubr.f32.gmra.mrb[0].mxu0 %v1232
      %v1234 = vpop.f32.mrb[0].mxu0
      %v1235 = vadd.f32 %v1117, %v1234
      %v1236 = vpop.f32.mrb[0].mxu0
      %1237 = vmatprep.mubr.f32.mxu0 0.0
      %v1238 = vand.u32 %v451, 4294901760
      %1239 = vmatmul.mubr.f32.gmra.mrb[0].mxu0 %v1238
      %v1240 = vpop.f32.mrb[0].mxu0
      %v1241 = vadd.f32 %v1123, %v1240
      %v1242 = vpop.f32.mrb[0].mxu0
      %1243 = vmatprep.mubr.f32.mxu0 0.0
      %v1244 = vand.u32 %v454, 4294901760
      %1245 = vmatmul.mubr.f32.gmra.mrb[0].mxu0 %v1244
      %v1246 = vpop.f32.mrb[0].mxu0
      %v1247 = vadd.f32 %v1129, %v1246
      %v1248 = vpop.f32.mrb[0].mxu0
      %1249 = vmatprep.mubr.f32.mxu0 0.0
      %v1250 = vand.u32 %v457, 4294901760
      %1251 = vmatmul.mubr.f32.gmra.mrb[0].mxu0 %v1250
      %v1252 = vpop.f32.mrb[0].mxu0
      %v1253 = vadd.f32 %v1135, %v1252
      %v1254 = vpop.f32.mrb[0].mxu0
      %1255 = vmatprep.mubr.f32.mxu0 0.0
      %v1256 = vand.u32 %v460, 4294901760
      %1257 = vmatmul.mubr.f32.gmra.mrb[0].mxu0 %v1256
      %v1258 = vpop.f32.mrb[0].mxu0
      %v1259 = vadd.f32 %v1141, %v1258
      %v1260 = vpop.f32.mrb[0].mxu0
      %1261 = vmatprep.mubr.f32.mxu0 0.0
      %v1262 = vand.u32 %v463, 4294901760
      %1263 = vmatmul.mubr.f32.gmra.mrb[0].mxu0 %v1262
      %v1264 = vpop.f32.mrb[0].mxu0
      %v1265 = vadd.f32 %v1147, %v1264
      %v1266 = vpop.f32.mrb[0].mxu0
      %1267 = vdwg.mxu0
      %v1268 = vsel %vm366, %v1223, 0.0
      %v1269 = vsel %vm366, %v1229, 0.0
      %v1270 = vadd.f32 %v1268, %v1269
      %v1271 = vsel %vm366, %v1235, 0.0
      %v1272 = vadd.f32 %v1270, %v1271
      %v1273 = vsel %vm366, %v1241, 0.0
      %v1274 = vadd.f32 %v1272, %v1273
      %v1275 = vsel %vm366, %v1247, 0.0
      %v1276 = vadd.f32 %v1274, %v1275
      %v1277 = vsel %vm366, %v1253, 0.0
      %v1278 = vadd.f32 %v1276, %v1277
      %v1279 = vsel %vm366, %v1259, 0.0
      %v1280 = vadd.f32 %v1278, %v1279
      %v1281 = vsel %vm366, %v1265, 0.0
      %v1282 = vadd.f32 %v1280, %v1281
      %v1283 = vrot.slane %v1282, 4
      %v1284 = vadd.f32 %v1282, %v1283
      %v1285 = vrot.slane %v1284, 2
      %v1286 = vadd.f32 %v1284, %v1285
      %v1287 = vrot.slane %v1286, 1
      %v1288 = vadd.f32 %v1286, %v1287
      %v1289 = vrcp.pop 64.0
      %v1290 = vmul.f32 %v1288, %v1289
      %v1291 = vsub.f32 %v1223, %v1290
      %v1292 = vsub.f32 %v1229, %v1290
      %v1293 = vsub.f32 %v1235, %v1290
      %v1294 = vsub.f32 %v1241, %v1290
      %v1295 = vsub.f32 %v1247, %v1290
      %v1296 = vsub.f32 %v1253, %v1290
      %v1297 = vsub.f32 %v1259, %v1290
      %v1298 = vsub.f32 %v1265, %v1290
      %v1299 = vmul.f32 %v1291, %v1291
      %v1300 = vmul.f32 %v1292, %v1292
      %v1301 = vmul.f32 %v1293, %v1293
      %v1302 = vmul.f32 %v1294, %v1294
      %v1303 = vmul.f32 %v1295, %v1295
      %v1304 = vmul.f32 %v1296, %v1296
      %v1305 = vmul.f32 %v1297, %v1297
      %v1306 = vmul.f32 %v1298, %v1298
      %v1307 = vsel %vm366, %v1299, 0.0
      %v1308 = vsel %vm366, %v1300, 0.0
      %v1309 = vadd.f32 %v1307, %v1308
      %v1310 = vsel %vm366, %v1301, 0.0
      %v1311 = vadd.f32 %v1309, %v1310
      %v1312 = vsel %vm366, %v1302, 0.0
      %v1313 = vadd.f32 %v1311, %v1312
      %v1314 = vsel %vm366, %v1303, 0.0
      %v1315 = vadd.f32 %v1313, %v1314
      %v1316 = vsel %vm366, %v1304, 0.0
      %v1317 = vadd.f32 %v1315, %v1316
      %v1318 = vsel %vm366, %v1305, 0.0
      %v1319 = vadd.f32 %v1317, %v1318
      %v1320 = vsel %vm366, %v1306, 0.0
      %v1321 = vadd.f32 %v1319, %v1320
      %v1322 = vrot.slane %v1321, 4
      %v1323 = vadd.f32 %v1321, %v1322
      %v1324 = vrot.slane %v1323, 2
      %v1325 = vadd.f32 %v1323, %v1324
      %v1326 = vrot.slane %v1325, 1
      %v1327 = vadd.f32 %v1325, %v1326
      %v1328 = vmul.f32 %v1327, %v1289
      %v1329 = vadd.f32 %v1328, 1e-05
      %v1330 = vrsqrt.pop %v1329
      %v1331 = vmul.f32 %v1291, %v1330
      %v1332 = vmul.f32 %v1292, %v1330
      %v1333 = vmul.f32 %v1293, %v1330
      %v1334 = vmul.f32 %v1294, %v1330
      %v1335 = vmul.f32 %v1295, %v1330
      %v1336 = vmul.f32 %v1296, %v1330
      %v1337 = vmul.f32 %v1297, %v1330
      %v1338 = vmul.f32 %v1298, %v1330
      %v1339 = vmax.f32 %v1331, 0.0
      %v1340 = vmax.f32 %v1332, 0.0
      %v1341 = vmax.f32 %v1333, 0.0
      %v1342 = vmax.f32 %v1334, 0.0
      %v1343 = vmax.f32 %v1335, 0.0
      %v1344 = vmax.f32 %v1336, 0.0
      %v1345 = vmax.f32 %v1337, 0.0
      %v1346 = vmax.f32 %v1338, 0.0
      %1347 = vst.msk [vmem:[%s170] sm:$0xff] %vm366, %v1339
      %1348 = vst.msk [vmem:[%s170 + $0x8] sm:$0xff] %vm366, %v1340
      %1349 = vst.msk [vmem:[%s170 + $0x10] sm:$0xff] %vm366, %v1341
      %1350 = vst.msk [vmem:[%s170 + $0x18] sm:$0xff] %vm366, %v1342
      %1351 = vst.msk [vmem:[%s170 + $0x20] sm:$0xff] %vm366, %v1343
      %1352 = vst.msk [vmem:[%s170 + $0x28] sm:$0xff] %vm366, %v1344
      %1353 = vst.msk [vmem:[%s170 + $0x30] sm:$0xff] %vm366, %v1345
      %1354 = vst.msk [vmem:[%s170 + $0x38] sm:$0xff] %vm366, %v1346
      %p1355 = scmp.lt.s32.totalorder %s14, 1
      %s1356 = scalar_select %p1355, %s14, 1
      %s1357 = smul.addr %s1356, 8
      %s1358 = smul.addr %s1357, 8
      %s1359 = scalar_lea.vmem %s3, %s1358
      // Predicated region
      $region33: #{down_block_forward.1} parent=31 // pred_check
        %p1360 = pneg %p100
      $region34: #{down_block_forward.1} parent=31 // pred_check_branch
        %1362 = sbr.rel (%p1360) target = $region36
      $region35: #{down_block_forward.1} parent=31 // pred_region
        _
      $region36: #{down_block_forward.1} parent=31 // pred_fallthru
        _
    $region32: #{down_block_forward.1} parent=5 // pred_fallthru
      _
    %p1363 = scmp.le.s32.totalorder 2, %s9
    // Predicated region
    $region37: #{down_block_forward.1} parent=5 // pred_check
      %p1364 = pneg %p1363
    $region38: #{down_block_forward.1} parent=5 // pred_check_branch
      %1366 = sbr.rel (%p1364) target = $region40
    $region39: #{down_block_forward.1} parent=5 // pred_region
      %s1367 = ssub.s32 %s9, 2
      // Predicated region
      $region41: #{down_block_forward.1} parent=39 // pred_check
        %p1368 = pneg %p106
      $region42: #{down_block_forward.1} parent=39 // pred_check_branch
        %1370 = sbr.rel (%p1368) target = $region44
      $region43: #{down_block_forward.1} parent=39 // pred_region
        %p1371 = scmp.lt.s32.totalorder %s15, 1
        %s1372 = scalar_select %p1371, %s15, 1
        %s1373 = smul.addr %s1372, 8
        %s1374 = smul.addr %s1373, 8
        %s1375 = scalar_lea.vmem %s3, %s1374
      $region44: #{down_block_forward.1} parent=39 // pred_fallthru
        _
    $region40: #{down_block_forward.1} parent=5 // pred_fallthru
      _
  $region6: #{down_block_forward.1} parent=0 // loop_footer
    %s13 = sadd.s32 1, %s9
  $region7: #{down_block_forward.1} parent=0 // loop_footer_branch
    %8 = sbr.rel target = $region3
  $region8: #{down_block_forward.1} parent=0 // loop_exit
    _

</llo_original>
